<compile_context>
chip_gen: v5e
topology: v5e:2x2
jax: 0.10.0
libtpu: 0.0.40
codegen_flags: <defaults>
</compile_context>

<pallas_src>
import math

import jax
import jax.numpy as jnp
from jax.experimental import pallas as pl
from jax.experimental.pallas import tpu as pltpu


def _round_up(n, m):
    return ((n + m - 1) // m) * m


def _mlp_kernel(x_ref,
                w0_ref, b0_ref,
                w1_ref, b1_ref,
                w2_ref, b2_ref,
                wo_ref, bo_ref,
                out_ref):
    # Hoist the tiny bias rows once per tile (f32).
    b0 = b0_ref[...]
    b1 = b1_ref[...]
    b2 = b2_ref[...]
    bo = bo_ref[...]

    # Hidden layer 1: relu(x @ W0 + b0).  MXU dot in bf16, f32 accumulate.
    h = jnp.dot(x_ref[...], w0_ref[...],
                preferred_element_type=jnp.float32) + b0
    h = jnp.maximum(h, 0.0)
    # Hidden layer 2
    h = jnp.dot(h.astype(w1_ref.dtype), w1_ref[...],
                preferred_element_type=jnp.float32) + b1
    h = jnp.maximum(h, 0.0)
    # Hidden layer 3
    h = jnp.dot(h.astype(w2_ref.dtype), w2_ref[...],
                preferred_element_type=jnp.float32) + b2
    h = jnp.maximum(h, 0.0)
    # Output head (no activation)
    out_ref[...] = (
        jnp.dot(h.astype(wo_ref.dtype), wo_ref[...],
                preferred_element_type=jnp.float32) + bo
    ).astype(out_ref.dtype)


def feedforward_net_pallas(x, params, *, block_rows=512,
                           compute_dtype=jnp.bfloat16):
    """params = list of (W, b) with W: (in, out), b: (1, out).

    block_rows: batch tile.  Keep <= ~4096 on v7x (64 MiB physical VMEM,
    32 MiB scoped default) -- the narrow minor dims pad to 128 lanes in VMEM.
    """
    batch, in_dim = x.shape
    out_dim = params[-1][0].shape[1]

    # Cast the streaming input (dominant HBM traffic) + weights to bf16.
    x_c = x.astype(compute_dtype)

    # Pick the batch tile: big tiles for the bulk-scoring path, one aligned
    # tile for small batches.  Pad batch to a multiple of the tile; padded
    # rows are sliced off the output, so no masking is needed.
    if batch >= block_rows:
        bt = block_rows
    else:
        bt = _round_up(max(batch, 1), 8)
    padded_batch = _round_up(batch, bt)
    if padded_batch != batch:
        x_c = jnp.pad(x_c, ((0, padded_batch - batch), (0, 0)))

    grid = (padded_batch // bt,)

    flat_args = [x_c]
    in_specs = [pl.BlockSpec((bt, in_dim), lambda i: (i, 0))]
    for w, b in params:
        flat_args.append(w.astype(compute_dtype))
        # Constant index_map -> the (tiny) weight stays VMEM-resident.
        in_specs.append(pl.BlockSpec(w.shape, lambda i: (0, 0)))
        flat_args.append(b.astype(jnp.float32))
        in_specs.append(pl.BlockSpec(b.shape, lambda i: (0, 0)))

    out = pl.pallas_call(
        _mlp_kernel,
        out_shape=jax.ShapeDtypeStruct((padded_batch, out_dim), jnp.float32),
        grid=grid,
        in_specs=in_specs,
        out_specs=pl.BlockSpec((bt, out_dim), lambda i: (i, 0)),
        compiler_params=pltpu.CompilerParams(
            dimension_semantics=("parallel",)),
    )(*flat_args)
    return out[:batch]


def xavier_uniform(key, fan_in, fan_out, dtype=jnp.float32):
    # Matches torch.nn.init.xavier_uniform_ (gain=1).
    limit = math.sqrt(6.0 / (fan_in + fan_out))
    # Stored as (in, out) so the kernel computes x @ W.
    return jax.random.uniform(key, (fan_in, fan_out), dtype=dtype,
                              minval=-limit, maxval=limit)


def make_params(key, input_dims=5, layer_width=(10, 10, 10), output_dims=1):
    # output_dims in the torch module is unused for self.out (always 1);
    # the argument is kept for signature parity.
    all_units = [input_dims] + list(layer_width)
    keys = jax.random.split(key, len(layer_width) + 1)
    params = []
    for i in range(len(layer_width)):
        w = xavier_uniform(keys[i], all_units[i], all_units[i + 1])
        b = jnp.zeros((1, all_units[i + 1]), jnp.float32)
        params.append((w, b))
    w_out = xavier_uniform(keys[-1], all_units[-1], 1)
    b_out = jnp.zeros((1, 1), jnp.float32)
    params.append((w_out, b_out))
    return params


def feedforward_net_ref(x, params, compute_dtype=jnp.float32):
    """Pure-JAX reference with the same dtype policy as the kernel."""
    h = x.astype(compute_dtype)
    for w, b in params[:-1]:
        h = jnp.maximum(
            jnp.dot(h, w.astype(compute_dtype),
                    preferred_element_type=jnp.float32) + b, 0.0)
        h = h.astype(compute_dtype)
    w, b = params[-1]
    return jnp.dot(h, w.astype(compute_dtype),
                   preferred_element_type=jnp.float32) + b


if __name__ == "__main__":
    key = jax.random.PRNGKey(0)
    k_x, k_x2, k_p = jax.random.split(key, 3)

    input_dims = 5
    params = make_params(k_p, input_dims=input_dims, layer_width=(10, 10, 10))

    # --- small-batch check (shapes the torch module implies) ---------------
    # NOTE: at batch=8 plain jit-ed XLA is the better call path; the kernel
    # exists for the bulk-scoring regime exercised below.
    batch = 8
    x = jax.random.normal(k_x, (batch, input_dims), dtype=jnp.float32)
    out = jax.block_until_ready(feedforward_net_pallas(x, params))
    ref_bf16 = feedforward_net_ref(x, params, compute_dtype=jnp.bfloat16)
    ref_f32 = feedforward_net_ref(x, params, compute_dtype=jnp.float32)
    assert out.shape == (batch, 1), out.shape
    assert jnp.allclose(out, ref_bf16, atol=1e-4, rtol=1e-4), (
        f"max abs diff vs bf16 ref = {jnp.max(jnp.abs(out - ref_bf16))}")
    assert jnp.allclose(out, ref_f32, atol=5e-2, rtol=5e-2), (
        f"max abs diff vs f32 ref = {jnp.max(jnp.abs(out - ref_f32))}")

    # --- bulk-scoring path: many rows, non-multiple of the 512-row tile ----
    batch2 = 1037
    x2 = jax.random.normal(k_x2, (batch2, input_dims), dtype=jnp.float32)
    out2 = jax.block_until_ready(feedforward_net_pallas(x2, params))
    ref2 = feedforward_net_ref(x2, params, compute_dtype=jnp.bfloat16)
    assert out2.shape == (batch2, 1), out2.shape
    assert jnp.allclose(out2, ref2, atol=1e-4, rtol=1e-4), (
        f"max abs diff (bulk) = {jnp.max(jnp.abs(out2 - ref2))}")

    print("KERNEL_OK")
</pallas_src>

<mosaic_0001>
module attributes {stable_mosaic.version = 11 : i64} {
  func.func @_mlp_kernel(%arg0: i32, %arg1: memref<8x5xbf16, #tpu.memory_space<vmem>>, %arg2: memref<5x10xbf16, #tpu.memory_space<vmem>>, %arg3: memref<1x10xf32, #tpu.memory_space<vmem>>, %arg4: memref<10x10xbf16, #tpu.memory_space<vmem>>, %arg5: memref<1x10xf32, #tpu.memory_space<vmem>>, %arg6: memref<10x10xbf16, #tpu.memory_space<vmem>>, %arg7: memref<1x10xf32, #tpu.memory_space<vmem>>, %arg8: memref<10x1xbf16, #tpu.memory_space<vmem>>, %arg9: memref<1x1xf32, #tpu.memory_space<vmem>>, %arg10: memref<8x1xf32, #tpu.memory_space<vmem>>) attributes {dimension_semantics = [#tpu.dimension_semantics<parallel>], iteration_bounds = array<i64: 1>, scalar_prefetch = 0 : i64, scratch_operands = 0 : i64, tpu.core_type = #tpu.core_type<tc>, window_params = [{transform_indices = @transform_0, window_bounds = array<i64: 8, 5>}, {pipeline_mode = #tpu.pipeline_mode<synchronous>, transform_indices = @transform_1, window_bounds = array<i64: 5, 10>}, {pipeline_mode = #tpu.pipeline_mode<synchronous>, transform_indices = @transform_2, window_bounds = array<i64: 1, 10>}, {pipeline_mode = #tpu.pipeline_mode<synchronous>, transform_indices = @transform_3, window_bounds = array<i64: 10, 10>}, {pipeline_mode = #tpu.pipeline_mode<synchronous>, transform_indices = @transform_4, window_bounds = array<i64: 1, 10>}, {pipeline_mode = #tpu.pipeline_mode<synchronous>, transform_indices = @transform_5, window_bounds = array<i64: 10, 10>}, {pipeline_mode = #tpu.pipeline_mode<synchronous>, transform_indices = @transform_6, window_bounds = array<i64: 1, 10>}, {pipeline_mode = #tpu.pipeline_mode<synchronous>, transform_indices = @transform_7, window_bounds = array<i64: 10, 1>}, {pipeline_mode = #tpu.pipeline_mode<synchronous>, transform_indices = @transform_8, window_bounds = array<i64: 1, 1>}, {transform_indices = @transform_9, window_bounds = array<i64: 8, 1>}]} {
    %c0 = arith.constant 0 : index
    %c0_0 = arith.constant 0 : index
    %0 = vector.load %arg3[%c0, %c0_0] : memref<1x10xf32, #tpu.memory_space<vmem>>, vector<1x10xf32>
    %c0_1 = arith.constant 0 : index
    %c0_2 = arith.constant 0 : index
    %1 = vector.load %arg5[%c0_1, %c0_2] : memref<1x10xf32, #tpu.memory_space<vmem>>, vector<1x10xf32>
    %c0_3 = arith.constant 0 : index
    %c0_4 = arith.constant 0 : index
    %2 = vector.load %arg7[%c0_3, %c0_4] : memref<1x10xf32, #tpu.memory_space<vmem>>, vector<1x10xf32>
    %c0_5 = arith.constant 0 : index
    %c0_6 = arith.constant 0 : index
    %3 = vector.load %arg9[%c0_5, %c0_6] : memref<1x1xf32, #tpu.memory_space<vmem>>, vector<1x1xf32>
    %c0_7 = arith.constant 0 : index
    %c0_8 = arith.constant 0 : index
    %4 = vector.load %arg1[%c0_7, %c0_8] : memref<8x5xbf16, #tpu.memory_space<vmem>>, vector<8x5xbf16>
    %c0_9 = arith.constant 0 : index
    %c0_10 = arith.constant 0 : index
    %5 = vector.load %arg2[%c0_9, %c0_10] : memref<5x10xbf16, #tpu.memory_space<vmem>>, vector<5x10xbf16>
    %cst = arith.constant dense<0.000000e+00> : vector<8x10xf32>
    %6 = tpu.matmul %4, %5, %cst {dimension_numbers = #tpu.dot_dimension_numbers<[1], [0], [0], [1], [0, 0, 1, 1], [], []>} : vector<8x5xbf16>, vector<5x10xbf16>, vector<8x10xf32> -> vector<8x10xf32>
    %7 = vector.broadcast %0 : vector<1x10xf32> to vector<8x10xf32>
    %8 = arith.addf %6, %7 : vector<8x10xf32>
    %cst_11 = arith.constant 0.000000e+00 : f32
    %9 = vector.broadcast %cst_11 : f32 to vector<8x10xf32>
    %10 = arith.maximumf %8, %9 : vector<8x10xf32>
    %11 = arith.truncf %10 : vector<8x10xf32> to vector<8x10xbf16>
    %c0_12 = arith.constant 0 : index
    %c0_13 = arith.constant 0 : index
    %12 = vector.load %arg4[%c0_12, %c0_13] : memref<10x10xbf16, #tpu.memory_space<vmem>>, vector<10x10xbf16>
    %cst_14 = arith.constant dense<0.000000e+00> : vector<8x10xf32>
    %13 = tpu.matmul %11, %12, %cst_14 {dimension_numbers = #tpu.dot_dimension_numbers<[1], [0], [0], [1], [0, 0, 1, 1], [], []>} : vector<8x10xbf16>, vector<10x10xbf16>, vector<8x10xf32> -> vector<8x10xf32>
    %14 = vector.broadcast %1 : vector<1x10xf32> to vector<8x10xf32>
    %15 = arith.addf %13, %14 : vector<8x10xf32>
    %cst_15 = arith.constant 0.000000e+00 : f32
    %16 = vector.broadcast %cst_15 : f32 to vector<8x10xf32>
    %17 = arith.maximumf %15, %16 : vector<8x10xf32>
    %18 = arith.truncf %17 : vector<8x10xf32> to vector<8x10xbf16>
    %c0_16 = arith.constant 0 : index
    %c0_17 = arith.constant 0 : index
    %19 = vector.load %arg6[%c0_16, %c0_17] : memref<10x10xbf16, #tpu.memory_space<vmem>>, vector<10x10xbf16>
    %cst_18 = arith.constant dense<0.000000e+00> : vector<8x10xf32>
    %20 = tpu.matmul %18, %19, %cst_18 {dimension_numbers = #tpu.dot_dimension_numbers<[1], [0], [0], [1], [0, 0, 1, 1], [], []>} : vector<8x10xbf16>, vector<10x10xbf16>, vector<8x10xf32> -> vector<8x10xf32>
    %21 = vector.broadcast %2 : vector<1x10xf32> to vector<8x10xf32>
    %22 = arith.addf %20, %21 : vector<8x10xf32>
    %cst_19 = arith.constant 0.000000e+00 : f32
    %23 = vector.broadcast %cst_19 : f32 to vector<8x10xf32>
    %24 = arith.maximumf %22, %23 : vector<8x10xf32>
    %25 = arith.truncf %24 : vector<8x10xf32> to vector<8x10xbf16>
    %c0_20 = arith.constant 0 : index
    %c0_21 = arith.constant 0 : index
    %26 = vector.load %arg8[%c0_20, %c0_21] : memref<10x1xbf16, #tpu.memory_space<vmem>>, vector<10x1xbf16>
    %cst_22 = arith.constant dense<0.000000e+00> : vector<8x1xf32>
    %27 = tpu.matmul %25, %26, %cst_22 {dimension_numbers = #tpu.dot_dimension_numbers<[1], [0], [0], [1], [0, 0, 1, 1], [], []>} : vector<8x10xbf16>, vector<10x1xbf16>, vector<8x1xf32> -> vector<8x1xf32>
    %28 = vector.broadcast %3 : vector<1x1xf32> to vector<8x1xf32>
    %29 = arith.addf %27, %28 : vector<8x1xf32>
    %c0_23 = arith.constant 0 : index
    %c0_24 = arith.constant 0 : index
    %30 = vector.load %arg10[%c0_23, %c0_24] : memref<8x1xf32, #tpu.memory_space<vmem>>, vector<8x1xf32>
    tpu.vector_store %arg10[%c0_23, %c0_24], %29 {strides = array<i32>} : memref<8x1xf32, #tpu.memory_space<vmem>>, vector<8x1xf32>,
    return
  }
  func.func @transform_0(%arg0: i32) -> (i32, i32) {
    %c0_i32 = arith.constant 0 : i32
    %c0_i32_0 = arith.constant 0 : i32
    return %arg0, %c0_i32 : i32, i32
  }
  func.func @transform_1(%arg0: i32) -> (i32, i32) {
    %c0_i32 = arith.constant 0 : i32
    %c0_i32_0 = arith.constant 0 : i32
    %c0_i32_1 = arith.constant 0 : i32
    return %c0_i32, %c0_i32_0 : i32, i32
  }
  func.func @transform_2(%arg0: i32) -> (i32, i32) {
    %c0_i32 = arith.constant 0 : i32
    %c0_i32_0 = arith.constant 0 : i32
    %c0_i32_1 = arith.constant 0 : i32
    return %c0_i32, %c0_i32_0 : i32, i32
  }
  func.func @transform_3(%arg0: i32) -> (i32, i32) {
    %c0_i32 = arith.constant 0 : i32
    %c0_i32_0 = arith.constant 0 : i32
    %c0_i32_1 = arith.constant 0 : i32
    return %c0_i32, %c0_i32_0 : i32, i32
  }
  func.func @transform_4(%arg0: i32) -> (i32, i32) {
    %c0_i32 = arith.constant 0 : i32
    %c0_i32_0 = arith.constant 0 : i32
    %c0_i32_1 = arith.constant 0 : i32
    return %c0_i32, %c0_i32_0 : i32, i32
  }
  func.func @transform_5(%arg0: i32) -> (i32, i32) {
    %c0_i32 = arith.constant 0 : i32
    %c0_i32_0 = arith.constant 0 : i32
    %c0_i32_1 = arith.constant 0 : i32
    return %c0_i32, %c0_i32_0 : i32, i32
  }
  func.func @transform_6(%arg0: i32) -> (i32, i32) {
    %c0_i32 = arith.constant 0 : i32
    %c0_i32_0 = arith.constant 0 : i32
    %c0_i32_1 = arith.constant 0 : i32
    return %c0_i32, %c0_i32_0 : i32, i32
  }
  func.func @transform_7(%arg0: i32) -> (i32, i32) {
    %c0_i32 = arith.constant 0 : i32
    %c0_i32_0 = arith.constant 0 : i32
    %c0_i32_1 = arith.constant 0 : i32
    return %c0_i32, %c0_i32_0 : i32, i32
  }
  func.func @transform_8(%arg0: i32) -> (i32, i32) {
    %c0_i32 = arith.constant 0 : i32
    %c0_i32_0 = arith.constant 0 : i32
    %c0_i32_1 = arith.constant 0 : i32
    return %c0_i32, %c0_i32_0 : i32, i32
  }
  func.func @transform_9(%arg0: i32) -> (i32, i32) {
    %c0_i32 = arith.constant 0 : i32
    %c0_i32_0 = arith.constant 0 : i32
    return %arg0, %c0_i32 : i32, i32
  }
}

</mosaic_0001>

<llo_original>
// kernel: tpu_custom_call.1
$region0: #{tpu_custom_call.1}
  #allocation0 [shape = 'u32[]', space=smem, size = 0x4, offset = 0x4, fixed_abs, tag = 'smem constant byte address 0x4 - core index']
  #allocation1 [shape = 'u32[72,128]{1,0:T(1,128)}', space=vmem, size = 0x9000, scoped, tag = 'internal scratch']
  #allocation2 [shape = 'f32[1,1]{1,0:T(1,128)S(1)}', space=vmem, size = 0x200, scoped, tag = 'scoped memory for tpu_custom_call.1']
  %s0 = inlined_call_operand.hbm [shape: bf16[8,5], index: 0, kind: input, shape index: {}]
  %s1 = inlined_call_operand.hbm [shape: bf16[5,10], index: 1, kind: input, shape index: {}]
  %s2 = inlined_call_operand.vmem [shape: f32[1,10], index: 2, kind: input, shape index: {}]
  %s3 = inlined_call_operand.vmem [shape: bf16[10,10], index: 3, kind: input, shape index: {}]
  %s4 = inlined_call_operand.vmem [shape: f32[1,10], index: 4, kind: input, shape index: {}]
  %s5 = inlined_call_operand.hbm [shape: bf16[10,10], index: 5, kind: input, shape index: {}]
  %s6 = inlined_call_operand.vmem [shape: f32[1,10], index: 6, kind: input, shape index: {}]
  %s7 = inlined_call_operand.vmem [shape: bf16[10,1], index: 7, kind: input, shape index: {}]
  %s8 = inlined_call_operand.<no memory space> [shape: f32[1,1], index: 8, kind: input, shape index: {}]
  %s9 = inlined_call_operand.vmem [shape: f32[8,1], index: 9, kind: output, shape index: {}]
  %s10 = sld [smem:[#allocation0]]
  $region58: #{tpu_custom_call.1} parent=0
    _
  %s12 = ssub.s32 1, %s10
  %s13 = scalar_select 0, %s12, %s10
  %v14 = vstv %s8
  %15 = vst [vmem:[#allocation2] sm:$0x1] %v14
  $region1: #{tpu_custom_call.1} parent=0
    #allocation3 [shape = 'u8[2048]{0}', space=vmem, size = 0x800, scoped, tag = 'input window, operand 0, single buffered']
    #allocation4 [shape = 's32[1]{0}', space=sflag, size = 0x4, scoped, tag = 'scoped memory for tpu_custom_call.1']
    #allocation5 [shape = 'u8[2048]{0}', space=vmem, size = 0x800, scoped, tag = 'input window, operand 1, single buffered']
    #allocation6 [shape = 's32[1]{0}', space=sflag, size = 0x4, scoped, tag = 'scoped memory for tpu_custom_call.1']
    #allocation7 [shape = 'u8[4096]{0}', space=vmem, size = 0x1000, scoped, tag = 'input window, operand 5, single buffered']
    %16 = vsyncpa [#allocation4], 0
    %17 = vsyncpa [#allocation6], 0
    // Predicated region
    $region2: #{tpu_custom_call.1} parent=1 // pred_check
      _
    $region3: #{tpu_custom_call.1} parent=1 // pred_check_branch
      %19 = sbr.rel (0) target = $region5
    $region4: #{tpu_custom_call.1} parent=1 // pred_region
      %21 = vsyncadd [#allocation4], 0
      %s23 = sshll.u32 %s0, 4
      %s24 = int_to_ptr.hbm [resolvable:$true] %s23
      %s25 = sshll.u32 [#allocation3], 4
      %s26 = int_to_ptr.vmem [resolvable:$true] %s25
      %28 = dma.hbm_to_vmem [thread:$0]  %s24, 64, %s26, [#allocation4]
    $region5: #{tpu_custom_call.1} parent=1 // pred_fallthru
      _
    // Predicated region
    $region6: #{tpu_custom_call.1} parent=1 // pred_check
      _
    $region7: #{tpu_custom_call.1} parent=1 // pred_check_branch
      %30 = sbr.rel (0) target = $region9
    $region8: #{tpu_custom_call.1} parent=1 // pred_region
      %32 = vsyncadd [#allocation6], 0
      %s34 = sshll.u32 %s1, 4
      %s35 = int_to_ptr.hbm [resolvable:$true] %s34
      %s36 = sshll.u32 [#allocation5], 4
      %s37 = int_to_ptr.vmem [resolvable:$true] %s36
      %39 = dma.hbm_to_vmem [thread:$0]  %s35, 64, %s37, [#allocation6]
    $region9: #{tpu_custom_call.1} parent=1 // pred_fallthru
      _
    // Predicated region
    $region10: #{tpu_custom_call.1} parent=1 // pred_check
      _
    $region11: #{tpu_custom_call.1} parent=1 // pred_check_branch
      %41 = sbr.rel (0) target = $region13
    $region12: #{tpu_custom_call.1} parent=1 // pred_region
      _
    $region13: #{tpu_custom_call.1} parent=1 // pred_fallthru
      _
    // Predicated region
    $region14: #{tpu_custom_call.1} parent=1 // pred_check
      _
    $region15: #{tpu_custom_call.1} parent=1 // pred_check_branch
      %43 = sbr.rel (0) target = $region17
    $region16: #{tpu_custom_call.1} parent=1 // pred_region
      _
    $region17: #{tpu_custom_call.1} parent=1 // pred_fallthru
      _
    // Predicated region
    $region18: #{tpu_custom_call.1} parent=1 // pred_check
      _
    $region19: #{tpu_custom_call.1} parent=1 // pred_check_branch
      %45 = sbr.rel (0) target = $region21
    $region20: #{tpu_custom_call.1} parent=1 // pred_region
      _
    $region21: #{tpu_custom_call.1} parent=1 // pred_fallthru
      _
    // Predicated region
    $region22: #{tpu_custom_call.1} parent=1 // pred_check
      _
    $region23: #{tpu_custom_call.1} parent=1 // pred_check_branch
      %47 = sbr.rel (0) target = $region25
    $region24: #{tpu_custom_call.1} parent=1 // pred_region
      %49 = vsyncadd [#allocation6], 0
      %s50 = sshll.u32 %s5, 4
      %s51 = int_to_ptr.hbm [resolvable:$true] %s50
      %s52 = sshll.u32 [#allocation7], 4
      %s53 = int_to_ptr.vmem [resolvable:$true] %s52
      %58 = dma.hbm_to_vmem [thread:$0]  %s51, 128, %s53, [#allocation6], 64, 64, 4
    $region25: #{tpu_custom_call.1} parent=1 // pred_fallthru
      _
    // Predicated region
    $region26: #{tpu_custom_call.1} parent=1 // pred_check
      _
    $region27: #{tpu_custom_call.1} parent=1 // pred_check_branch
      %60 = sbr.rel (0) target = $region29
    $region28: #{tpu_custom_call.1} parent=1 // pred_region
      _
    $region29: #{tpu_custom_call.1} parent=1 // pred_fallthru
      _
    // Predicated region
    $region30: #{tpu_custom_call.1} parent=1 // pred_check
      _
    $region31: #{tpu_custom_call.1} parent=1 // pred_check_branch
      %62 = sbr.rel (0) target = $region33
    $region32: #{tpu_custom_call.1} parent=1 // pred_region
      _
    $region33: #{tpu_custom_call.1} parent=1 // pred_fallthru
      _
    // Predicated region
    $region34: #{tpu_custom_call.1} parent=1 // pred_check
      _
    $region35: #{tpu_custom_call.1} parent=1 // pred_check_branch
      %64 = sbr.rel (0) target = $region37
    $region36: #{tpu_custom_call.1} parent=1 // pred_region
      _
    $region37: #{tpu_custom_call.1} parent=1 // pred_fallthru
      _
    // Predicated region
    $region38: #{tpu_custom_call.1} parent=1 // pred_check
      _
    $region39: #{tpu_custom_call.1} parent=1 // pred_check_branch
      %66 = sbr.rel (0) target = $region41
    $region40: #{tpu_custom_call.1} parent=1 // pred_region
      %68 = dma.done [#allocation4], 64
    $region41: #{tpu_custom_call.1} parent=1 // pred_fallthru
      _
    // Predicated region
    $region42: #{tpu_custom_call.1} parent=1 // pred_check
      _
    $region43: #{tpu_custom_call.1} parent=1 // pred_check_branch
      %70 = sbr.rel (0) target = $region45
    $region44: #{tpu_custom_call.1} parent=1 // pred_region
      %72 = dma.done [#allocation6], 64
    $region45: #{tpu_custom_call.1} parent=1 // pred_fallthru
      _
    // Predicated region
    $region46: #{tpu_custom_call.1} parent=1 // pred_check
      _
    $region47: #{tpu_custom_call.1} parent=1 // pred_check_branch
      %74 = sbr.rel (0) target = $region49
    $region48: #{tpu_custom_call.1} parent=1 // pred_region
      %76 = dma.done [#allocation6], 128
    $region49: #{tpu_custom_call.1} parent=1 // pred_fallthru
      _
    %v78 = vld [vmem:[%s2] sm:$0x1]
    %v79 = vld [vmem:[%s4] sm:$0x1]
    %v80 = vld [vmem:[%s6] sm:$0x1]
    %v81 = vld [vmem:[#allocation2] sm:$0x1]
    %v82 = vld [vmem:[#allocation3] sm:$0xf]
    %v83 = vld [vmem:[#allocation5] sm:$0x7]
    %v85 = vperm.slane %v78, 0
    %vm87 = vcmask 39936
    %v89 = vsel %vm87, %v82, 0
    %vm91 = vcmask 1041408
    %vm92 = vcmask 1042432
    %v93 = vsel %vm91, 4294967295, 65535
    %v94 = vsel %vm92, %v93, 0
    %v96 = vand.u32 %v83, %v94
    %98 = vmatpush.bf16.msra.mxu0 0
    %99 = vmatpush.bf16.msra.mxu0 0
    %100 = vmatpush.bf16.msra.mxu0 0
    %101 = vmatpush.bf16.msra.mxu0 0
    %102 = vmatpush.bf16.msra.mxu0 0
    %103 = vmatpush.bf16.msra.mxu0 0
    %104 = vmatpush.bf16.msra.mxu0 0
    %105 = vmatpush.bf16.msra.mxu0 %v96
    %106 = vmatmul.bf16.gmra.mxu0 %v89
    %v107 = vpop.f32.mrf.mxu0
    %v108 = vadd.f32 %v85, %v107
    %v109 = vpop.f32.mrf.mxu0
    %110 = vdwg.mxu0
    %v111 = vmax.f32 %v108, 0.0
    %v112 = vpack.c.bf16 %v111, %v111
    %v113 = vld [vmem:[%s3] sm:$0xf]
    %v114 = vld [vmem:[%s3 + $0x4] sm:$0x1]
    %v116 = vperm.slane %v79, 0
    %v120 = vunpack.c.l.b16 %v113
    %v121 = vunpack.c.l.b16 %v114
    %v122 = vpack.c.b16 %v121, %v120
    %vm123 = vcmask 80896
    %v125 = vsel %vm123, %v112, 0
    %vm127 = vcmask 1044480
    %v129 = vsel %vm127, %v122, 0
    %131 = vmatpush.bf16.msra.mxu0 0
    %132 = vmatpush.bf16.msra.mxu0 0
    %133 = vmatpush.bf16.msra.mxu0 0
    %134 = vmatpush.bf16.msra.mxu0 0
    %135 = vmatpush.bf16.msra.mxu0 0
    %136 = vmatpush.bf16.msra.mxu0 0
    %137 = vmatpush.bf16.msra.mxu0 0
    %138 = vmatpush.bf16.msra.mxu0 %v129
    %139 = vmatmul.bf16.gmra.mxu0 %v125
    %v140 = vpop.f32.mrf.mxu0
    %v141 = vadd.f32 %v116, %v140
    %v142 = vpop.f32.mrf.mxu0
    %143 = vdwg.mxu0
    %v144 = vmax.f32 %v141, 0.0
    %v145 = vpack.c.bf16 %v144, %v144
    %v146 = vld [vmem:[#allocation7] sm:$0xf]
    %v147 = vld [vmem:[#allocation7 + $0x4] sm:$0x1]
    %v149 = vperm.slane %v80, 0
    %v153 = vunpack.c.l.b16 %v146
    %v154 = vunpack.c.l.b16 %v147
    %v155 = vpack.c.b16 %v154, %v153
    %v157 = vsel %vm123, %v145, 0
    %v160 = vsel %vm127, %v155, 0
    %162 = vmatpush.bf16.msra.mxu0 0
    %163 = vmatpush.bf16.msra.mxu0 0
    %164 = vmatpush.bf16.msra.mxu0 0
    %165 = vmatpush.bf16.msra.mxu0 0
    %166 = vmatpush.bf16.msra.mxu0 0
    %167 = vmatpush.bf16.msra.mxu0 0
    %168 = vmatpush.bf16.msra.mxu0 0
    %169 = vmatpush.bf16.msra.mxu0 %v160
    %170 = vmatmul.bf16.gmra.mxu0 %v157
    %v171 = vpop.f32.mrf.mxu0
    %v172 = vadd.f32 %v149, %v171
    %v173 = vpop.f32.mrf.mxu0
    %174 = vdwg.mxu0
    %v175 = vmax.f32 %v172, 0.0
    %v176 = vpack.c.bf16 %v175, %v175
    %v177 = vld [vmem:[%s7] sm:$0xf]
    %v178 = vld [vmem:[%s7 + $0x4] sm:$0x1]
    %v180 = vperm.slane %v81, 0
    %v184 = vunpack.c.l.b16 %v177
    %v185 = vunpack.c.l.b16 %v178
    %v186 = vpack.c.b16 %v185, %v184
    %v188 = vsel %vm123, %v176, 0
    %v191 = vsel %vm127, %v186, 0
    %193 = vmatpush.bf16.msra.mxu0 0
    %194 = vmatpush.bf16.msra.mxu0 0
    %195 = vmatpush.bf16.msra.mxu0 0
    %196 = vmatpush.bf16.msra.mxu0 0
    %197 = vmatpush.bf16.msra.mxu0 0
    %198 = vmatpush.bf16.msra.mxu0 0
    %199 = vmatpush.bf16.msra.mxu0 0
    %200 = vmatpush.bf16.msra.mxu0 %v191
    %201 = vmatmul.bf16.gmra.mxu0 %v188
    %v202 = vpop.f32.mrf.mxu0
    %v203 = vadd.f32 %v180, %v202
    %v204 = vpop.f32.mrf.mxu0
    %205 = vdwg.mxu0
    %vm206 = vcmask 7168
    %207 = vst.msk [vmem:[%s9] sm:$0xff] %vm206, %v203
    // Predicated region
    $region50: #{tpu_custom_call.1} parent=1 // pred_check
      _
    $region51: #{tpu_custom_call.1} parent=1 // pred_check_branch
      %209 = sbr.rel (0) target = $region53
    $region52: #{tpu_custom_call.1} parent=1 // pred_region
      _
    $region53: #{tpu_custom_call.1} parent=1 // pred_fallthru
      _
    // Predicated region
    $region54: #{tpu_custom_call.1} parent=1 // pred_check
      _
    $region55: #{tpu_custom_call.1} parent=1 // pred_check_branch
      %211 = sbr.rel (0) target = $region57
    $region56: #{tpu_custom_call.1} parent=1 // pred_region
      _
    $region57: #{tpu_custom_call.1} parent=1 // pred_fallthru
      _
    %212 = vsyncpa [#allocation4], 1
    %213 = vsyncpa [#allocation6], 1

</llo_original>
